<compile_context>
chip_gen: v7x
topology: tpu7x:2x2x1
jax: 0.10.0
libtpu: 0.0.40
codegen_flags: <defaults>
</compile_context>

<pallas_src>
import functools

import jax
import jax.numpy as jnp
from jax.experimental import pallas as pl
from jax.experimental.pallas import tpu as pltpu

_LANE = 128
_SUBLANE = 8


def _round_up(n, m):
    return (n + m - 1) // m * m


def _cdiv(a, b):
    return -(-a // b)


# ---------------------------------------------------------------------------
# Kernel (feature-major layout; batch on the lane axis)
# ---------------------------------------------------------------------------
def _make_kernel(vpu_layer1: bool, bf16_mxu: bool):
    """Fused 2-layer MLP kernel.

    Blocks per grid step:
      x_ref  : (Dp, TB)   input,  batch on lanes (lane-dense)
      w1_ref : (Hp, Dp)   layer-1 weight, transposed
      b1_ref : (Hp, 1)
      w2_ref : (Hp, Hp)   layer-2 weight, transposed
      b2_ref : (Hp, 1)
      o_ref  : (Hp, TB)   output, batch on lanes (lane-dense store)
    """
    # bf16 operands / f32 accumulation only at MXU-bound sizes (Hp >= 1024);
    # elementwise / VPU math stays f32 (v5e's VPU has no bf16).
    cast = (lambda a: a.astype(jnp.bfloat16)) if bf16_mxu else (lambda a: a)

    def kernel(x_ref, w1_ref, b1_ref, w2_ref, b2_ref, o_ref):
        x = x_ref[...]                                         # (Dp, TB) f32
        if vpu_layer1:
            # Din == 1: layer 1 is a VPU broadcast outer product
            # (Hp,1)*(1,TB) -> (Hp,TB); skips the MXU push/pop latency chain.
            h1 = w1_ref[...] * x + b1_ref[...]
        else:
            h1 = jnp.dot(cast(w1_ref[...]), cast(x),
                         preferred_element_type=jnp.float32) + b1_ref[...]
        h1 = jnp.maximum(h1, 0.0)                              # (Hp, TB)
        # Layer 2 on the MXU; Hp and TB are multiples of 128 -> lane-dense.
        h2 = jnp.dot(cast(w2_ref[...]), cast(h1),
                     preferred_element_type=jnp.float32)
        o_ref[...] = jnp.maximum(h2 + b2_ref[...], 0.0).astype(o_ref.dtype)

    return kernel


# ---------------------------------------------------------------------------
# One-time parameter preparation (hoisted out of the per-call path)
# ---------------------------------------------------------------------------
def prepare_params(w1, b1, w2, b2):
    """Pad + transpose weights once.  w1: (Din,H), b1: (H,), w2: (H,H), b2: (H,).

    Returns feature-major padded params (w1t, b1c, w2t, b2c) with the hidden
    (feature) dim zero-padded to a multiple of 128.  Zero padding is exact
    through both layers (ReLU(0)=0).
    """
    din, h = w1.shape
    hp = _round_up(h, _LANE)
    dp = 1 if din == 1 else _round_up(din, _SUBLANE)
    w1t = jnp.zeros((hp, dp), jnp.float32).at[:h, :din].set(w1.T)
    b1c = jnp.zeros((hp, 1), jnp.float32).at[:h, 0].set(b1)
    w2t = jnp.zeros((hp, hp), jnp.float32).at[:h, :h].set(w2.T)
    b2c = jnp.zeros((hp, 1), jnp.float32).at[:h, 0].set(b2)
    # TODO(synk): at very large H, store w2t in bf16 here to also halve its
    # HBM->VMEM DMA (the kernel already casts MXU operands to bf16 then).
    return w1t, b1c, w2t, b2c


# ---------------------------------------------------------------------------
# Forward wrapper (jit this; shape logic is static)
# ---------------------------------------------------------------------------
def toy_feature_net(x, padded_params, hidden_dim, *, block_b=512,
                    min_pallas_batch=129):
    """x: (B, Din) f32 -> (B, hidden_dim) f32, matching
    ReLU(ReLU(x@W1.T+b1)@W2.T+b2) of the PyTorch module."""
    w1t, b1c, w2t, b2c = padded_params
    B, Din = x.shape
    Hp, Dp = w1t.shape
    H = hidden_dim
    assert H <= Hp and Din <= Dp

    # Tiny problems: pallas fixed cost + pad/crop dominate -> one fused XLA op.
    if B < min_pallas_batch:
        h1 = jnp.maximum(jnp.dot(w1t[:, :Din], x.T.astype(jnp.float32)) + b1c, 0.0)
        h2 = jnp.maximum(jnp.dot(w2t, h1) + b2c, 0.0)
        return h2[:H, :].T

    # ----- batch tiling (lane-major: TB must be a multiple of 128) -----
    block_b = max(int(block_b), _LANE)
    num_tiles = _cdiv(B, block_b)
    if B > 3 * _LANE:
        # v7x has 2 TensorCores: make sure both get a batch tile.  For
        # B in (384, 512] this costs zero extra padding; no harm on v5e/v6e.
        num_tiles = max(num_tiles, 2)
    TB = _round_up(_cdiv(B, num_tiles), _LANE)
    Bp = TB * num_tiles

    # Per-call input prep: pad the (small) feature-major input only.  Padded
    # batch columns produce garbage that is cropped below; padded feature rows
    # are exactly zero.
    xt = jnp.zeros((Dp, Bp), jnp.float32).at[:Din, :B].set(
        x.T.astype(jnp.float32))

    bf16_mxu = Hp >= 1024          # bf16 MXU operands only at MXU-bound sizes
    kernel = _make_kernel(vpu_layer1=(Dp == 1), bf16_mxu=bf16_mxu)
    out_shape = jax.ShapeDtypeStruct((Hp, Bp), jnp.float32)

    if num_tiles == 1:
        # Single block: no grid -> no per-step pipelining overhead.
        out_t = pl.pallas_call(kernel, out_shape=out_shape)(
            xt, w1t, b1c, w2t, b2c)
    else:
        # Weight-stationary grid over the batch (lane) axis.  Stationary
        # operands have constant index maps; once w2 grows large, drop its
        # double buffering (halves its VMEM footprint, matters for v7x's
        # 64 MiB VMEM).  No-op at Hp=128.
        big_w2 = w2t.size * w2t.dtype.itemsize > (4 << 20)
        w2_kwargs = {"pipeline_mode": pl.Buffered(1)} if big_w2 else {}
        out_t = pl.pallas_call(
            kernel,
            out_shape=out_shape,
            grid=(num_tiles,),
            in_specs=[
                pl.BlockSpec((Dp, TB), lambda i: (0, i)),   # x tile (lane-dense)
                pl.BlockSpec((Hp, Dp), lambda i: (0, 0)),   # w1 (stationary)
                pl.BlockSpec((Hp, 1), lambda i: (0, 0)),    # b1
                pl.BlockSpec((Hp, Hp), lambda i: (0, 0), **w2_kwargs),  # w2
                pl.BlockSpec((Hp, 1), lambda i: (0, 0)),    # b2
            ],
            out_specs=pl.BlockSpec((Hp, TB), lambda i: (0, i)),
            compiler_params=pltpu.CompilerParams(
                dimension_semantics=("parallel",)),
        )(xt, w1t, b1c, w2t, b2c)

    # Crop + restore (B, H) orientation.  The H/B slice is tiny; under jit it
    # fuses into the consumer rather than re-reading the padded output from
    # HBM.  Callers that can consume the feature-major padded (Hp, Bp) layout
    # directly should skip this entirely.
    return out_t[:H, :B].T


# ---------------------------------------------------------------------------
# Params / reference
# ---------------------------------------------------------------------------
def init_params(key, input_dim=1, hidden_dim=10):
    # PyTorch nn.Linear default init U(-1/sqrt(fan_in), 1/sqrt(fan_in)).
    # Weights stored (in_features, out_features) so y = x @ w + b == x @ W.T.
    k1, k2, k3, k4 = jax.random.split(key, 4)
    bound1 = 1.0 / jnp.sqrt(jnp.float32(input_dim))
    bound2 = 1.0 / jnp.sqrt(jnp.float32(hidden_dim))
    w1 = jax.random.uniform(k1, (input_dim, hidden_dim), jnp.float32,
                            -bound1, bound1)
    b1 = jax.random.uniform(k2, (hidden_dim,), jnp.float32, -bound1, bound1)
    w2 = jax.random.uniform(k3, (hidden_dim, hidden_dim), jnp.float32,
                            -bound2, bound2)
    b2 = jax.random.uniform(k4, (hidden_dim,), jnp.float32, -bound2, bound2)
    return w1, b1, w2, b2


def reference(x, w1, b1, w2, b2):
    h = jnp.maximum(x @ w1 + b1, 0.0)
    return jnp.maximum(h @ w2 + b2, 0.0)


if __name__ == "__main__":
    key = jax.random.PRNGKey(0)
    k_x, k_p, k_x2 = jax.random.split(key, 3)

    input_dim, hidden_dim = 1, 10
    raw = init_params(k_p, input_dim, hidden_dim)
    padded = prepare_params(*raw)          # one-time pad/transpose (hoisted)

    # Jitted forward that always takes the Pallas path (pad + kernel + crop
    # compiled as one program so the crop fuses).
    fwd_pallas = jax.jit(functools.partial(
        toy_feature_net, hidden_dim=hidden_dim, min_pallas_batch=0))

    # Small shape matching the module defaults: exercises the no-grid kernel.
    batch = 8
    x = jax.random.normal(k_x, (batch, input_dim), jnp.float32)
    out = jax.block_until_ready(fwd_pallas(x, padded))
    ref = reference(x, *raw)
    assert out.shape == (batch, hidden_dim)
    assert jnp.allclose(out, ref, atol=1e-5, rtol=1e-5)

    # Larger batch: exercises the tiled, weight-stationary, "parallel" path
    # (B=1040 -> 3 tiles of TB=384, Bp=1152).
    big_batch = 1040
    xb = jax.random.normal(k_x2, (big_batch, input_dim), jnp.float32)
    out_b = jax.block_until_ready(fwd_pallas(xb, padded))
    ref_b = reference(xb, *raw)
    assert out_b.shape == (big_batch, hidden_dim)
    assert jnp.allclose(out_b, ref_b, atol=1e-5, rtol=1e-5)

    # Default dispatch: tiny batches short-circuit to a single fused XLA op.
    fwd_default = jax.jit(functools.partial(
        toy_feature_net, hidden_dim=hidden_dim))
    out_s = jax.block_until_ready(fwd_default(x, padded))
    assert jnp.allclose(out_s, ref, atol=1e-5, rtol=1e-5)

    print("KERNEL_OK")
</pallas_src>

<mosaic_0001>
module attributes {stable_mosaic.version = 11 : i64} {
  func.func @kernel(%arg0: memref<1x128xf32, #tpu.memory_space<vmem>>, %arg1: memref<128x1xf32, #tpu.memory_space<vmem>>, %arg2: memref<128x1xf32, #tpu.memory_space<vmem>>, %arg3: memref<128x128xf32, #tpu.memory_space<vmem>>, %arg4: memref<128x1xf32, #tpu.memory_space<vmem>>, %arg5: memref<128x128xf32, #tpu.memory_space<vmem>>) attributes {dimension_semantics = [], scalar_prefetch = 0 : i64, scratch_operands = 0 : i64, tpu.core_type = #tpu.core_type<tc>} {
    %c0 = arith.constant 0 : index
    %c0_0 = arith.constant 0 : index
    %0 = vector.load %arg0[%c0, %c0_0] : memref<1x128xf32, #tpu.memory_space<vmem>>, vector<1x128xf32>
    %c0_1 = arith.constant 0 : index
    %c0_2 = arith.constant 0 : index
    %1 = vector.load %arg1[%c0_1, %c0_2] : memref<128x1xf32, #tpu.memory_space<vmem>>, vector<128x1xf32>
    %2 = vector.broadcast %1 : vector<128x1xf32> to vector<128x128xf32>
    %3 = vector.broadcast %0 : vector<1x128xf32> to vector<128x128xf32>
    %4 = arith.mulf %2, %3 : vector<128x128xf32>
    %c0_3 = arith.constant 0 : index
    %c0_4 = arith.constant 0 : index
    %5 = vector.load %arg2[%c0_3, %c0_4] : memref<128x1xf32, #tpu.memory_space<vmem>>, vector<128x1xf32>
    %6 = vector.broadcast %5 : vector<128x1xf32> to vector<128x128xf32>
    %7 = arith.addf %4, %6 : vector<128x128xf32>
    %cst = arith.constant 0.000000e+00 : f32
    %8 = vector.broadcast %cst : f32 to vector<128x128xf32>
    %9 = arith.maximumf %7, %8 : vector<128x128xf32>
    %c0_5 = arith.constant 0 : index
    %c0_6 = arith.constant 0 : index
    %10 = vector.load %arg3[%c0_5, %c0_6] : memref<128x128xf32, #tpu.memory_space<vmem>>, vector<128x128xf32>
    %cst_7 = arith.constant dense<0.000000e+00> : vector<128x128xf32>
    %11 = tpu.matmul %10, %9, %cst_7 {dimension_numbers = #tpu.dot_dimension_numbers<[1], [0], [0], [1], [0, 0, 1, 1], [], []>} : vector<128x128xf32>, vector<128x128xf32>, vector<128x128xf32> -> vector<128x128xf32>
    %c0_8 = arith.constant 0 : index
    %c0_9 = arith.constant 0 : index
    %12 = vector.load %arg4[%c0_8, %c0_9] : memref<128x1xf32, #tpu.memory_space<vmem>>, vector<128x1xf32>
    %13 = vector.broadcast %12 : vector<128x1xf32> to vector<128x128xf32>
    %14 = arith.addf %11, %13 : vector<128x128xf32>
    %cst_10 = arith.constant 0.000000e+00 : f32
    %15 = vector.broadcast %cst_10 : f32 to vector<128x128xf32>
    %16 = arith.maximumf %14, %15 : vector<128x128xf32>
    %c0_11 = arith.constant 0 : index
    %c0_12 = arith.constant 0 : index
    %17 = vector.load %arg5[%c0_11, %c0_12] : memref<128x128xf32, #tpu.memory_space<vmem>>, vector<128x128xf32>
    tpu.vector_store %arg5[%c0_11, %c0_12], %16 {strides = array<i32>} : memref<128x128xf32, #tpu.memory_space<vmem>>, vector<128x128xf32>,
    return
  }
}

</mosaic_0001>

<llo_original>
// kernel: toy_feature_net.1
$region0: #{toy_feature_net.1}
  #allocation0 [shape = 'u32[]', space=smem, size = 0x4, offset = 0x4, fixed_abs, tag = 'smem constant byte address 0x4 - core index']
  #allocation1 [shape = 'u32[144,128]{1,0:T(1,128)}', space=vmem, size = 0x12000, scoped, tag = 'internal scratch']
  %s0 = inlined_call_operand.vmem [shape: f32[1,128], index: 0, kind: input, shape index: {}]
  %s1 = inlined_call_operand.vmem [shape: f32[128,1], index: 1, kind: input, shape index: {}]
  %s2 = inlined_call_operand.vmem [shape: f32[128,1], index: 2, kind: input, shape index: {}]
  %s3 = inlined_call_operand.vmem [shape: f32[128,128], index: 3, kind: input, shape index: {}]
  %s4 = inlined_call_operand.vmem [shape: f32[128,1], index: 4, kind: input, shape index: {}]
  %s5 = inlined_call_operand.vmem [shape: f32[128,128], index: 5, kind: output, shape index: {}]
  %s6 = sld [smem:[#allocation0]]
  $region30: #{toy_feature_net.1} parent=0
    _
  %s8 = ssub.s32 1, %s6
  %s9 = scalar_select 0, %s8, %s6
  // Predicated region
  $region2: #{toy_feature_net.1} parent=0 // pred_check
    _
  $region3: #{toy_feature_net.1} parent=0 // pred_check_branch
    %11 = sbr.rel (0) target = $region5
  $region4: #{toy_feature_net.1} parent=0 // pred_region
    _
  $region5: #{toy_feature_net.1} parent=0 // pred_fallthru
    _
  // Predicated region
  $region6: #{toy_feature_net.1} parent=0 // pred_check
    _
  $region7: #{toy_feature_net.1} parent=0 // pred_check_branch
    %13 = sbr.rel (0) target = $region9
  $region8: #{toy_feature_net.1} parent=0 // pred_region
    _
  $region9: #{toy_feature_net.1} parent=0 // pred_fallthru
    _
  // Predicated region
  $region10: #{toy_feature_net.1} parent=0 // pred_check
    _
  $region11: #{toy_feature_net.1} parent=0 // pred_check_branch
    %15 = sbr.rel (0) target = $region13
  $region12: #{toy_feature_net.1} parent=0 // pred_region
    _
  $region13: #{toy_feature_net.1} parent=0 // pred_fallthru
    _
  // Predicated region
  $region14: #{toy_feature_net.1} parent=0 // pred_check
    _
  $region15: #{toy_feature_net.1} parent=0 // pred_check_branch
    %17 = sbr.rel (0) target = $region17
  $region16: #{toy_feature_net.1} parent=0 // pred_region
    _
  $region17: #{toy_feature_net.1} parent=0 // pred_fallthru
    _
  // Predicated region
  $region18: #{toy_feature_net.1} parent=0 // pred_check
    _
  $region19: #{toy_feature_net.1} parent=0 // pred_check_branch
    %19 = sbr.rel (0) target = $region21
  $region20: #{toy_feature_net.1} parent=0 // pred_region
    _
  $region21: #{toy_feature_net.1} parent=0 // pred_fallthru
    _
  %v20 = vld [vmem:[%s0] sm:$0x1]
  %v21 = vld [vmem:[%s1] sm:$0xff]
  %v22 = vld [vmem:[%s1 + $0x8] sm:$0xff]
  %v23 = vld [vmem:[%s1 + $0x10] sm:$0xff]
  %v24 = vld [vmem:[%s1 + $0x18] sm:$0xff]
  %v25 = vld [vmem:[%s1 + $0x20] sm:$0xff]
  %v26 = vld [vmem:[%s1 + $0x28] sm:$0xff]
  %v27 = vld [vmem:[%s1 + $0x30] sm:$0xff]
  %v28 = vld [vmem:[%s1 + $0x38] sm:$0xff]
  %v29 = vld [vmem:[%s1 + $0x40] sm:$0xff]
  %v30 = vld [vmem:[%s1 + $0x48] sm:$0xff]
  %v31 = vld [vmem:[%s1 + $0x50] sm:$0xff]
  %v32 = vld [vmem:[%s1 + $0x58] sm:$0xff]
  %v33 = vld [vmem:[%s1 + $0x60] sm:$0xff]
  %v34 = vld [vmem:[%s1 + $0x68] sm:$0xff]
  %v35 = vld [vmem:[%s1 + $0x70] sm:$0xff]
  %v36 = vld [vmem:[%s1 + $0x78] sm:$0xff]
  %38 = vset.pattern.permute.xlu0 0
  %39 = vperm.xlu0 %38, %v21
  %v40 = vpop.permute.xlu0 %39
  %43 = vset.pattern.permute.xlu0 0
  %44 = vperm.xlu0 %43, %v22
  %v45 = vpop.permute.xlu0 %44
  %48 = vset.pattern.permute.xlu0 0
  %49 = vperm.xlu0 %48, %v23
  %v50 = vpop.permute.xlu0 %49
  %53 = vset.pattern.permute.xlu0 0
  %54 = vperm.xlu0 %53, %v24
  %v55 = vpop.permute.xlu0 %54
  %58 = vset.pattern.permute.xlu0 0
  %59 = vperm.xlu0 %58, %v25
  %v60 = vpop.permute.xlu0 %59
  %63 = vset.pattern.permute.xlu0 0
  %64 = vperm.xlu0 %63, %v26
  %v65 = vpop.permute.xlu0 %64
  %68 = vset.pattern.permute.xlu0 0
  %69 = vperm.xlu0 %68, %v27
  %v70 = vpop.permute.xlu0 %69
  %73 = vset.pattern.permute.xlu0 0
  %74 = vperm.xlu0 %73, %v28
  %v75 = vpop.permute.xlu0 %74
  %78 = vset.pattern.permute.xlu0 0
  %79 = vperm.xlu0 %78, %v29
  %v80 = vpop.permute.xlu0 %79
  %83 = vset.pattern.permute.xlu0 0
  %84 = vperm.xlu0 %83, %v30
  %v85 = vpop.permute.xlu0 %84
  %88 = vset.pattern.permute.xlu0 0
  %89 = vperm.xlu0 %88, %v31
  %v90 = vpop.permute.xlu0 %89
  %93 = vset.pattern.permute.xlu0 0
  %94 = vperm.xlu0 %93, %v32
  %v95 = vpop.permute.xlu0 %94
  %98 = vset.pattern.permute.xlu0 0
  %99 = vperm.xlu0 %98, %v33
  %v100 = vpop.permute.xlu0 %99
  %103 = vset.pattern.permute.xlu0 0
  %104 = vperm.xlu0 %103, %v34
  %v105 = vpop.permute.xlu0 %104
  %108 = vset.pattern.permute.xlu0 0
  %109 = vperm.xlu0 %108, %v35
  %v110 = vpop.permute.xlu0 %109
  %113 = vset.pattern.permute.xlu0 0
  %114 = vperm.xlu0 %113, %v36
  %v115 = vpop.permute.xlu0 %114
  %v118 = vlaneseq
  %v119 = vshrl.u32 %v118, 7
  %v120 = vsub.s32 0, %v119
  %v121 = vrot.slane %v20, %v120
  %v123 = vmul.f32 %v40, %v121
  %v124 = vmul.f32 %v45, %v121
  %v125 = vmul.f32 %v50, %v121
  %v126 = vmul.f32 %v55, %v121
  %v127 = vmul.f32 %v60, %v121
  %v128 = vmul.f32 %v65, %v121
  %v129 = vmul.f32 %v70, %v121
  %v130 = vmul.f32 %v75, %v121
  %v131 = vmul.f32 %v80, %v121
  %v132 = vmul.f32 %v85, %v121
  %v133 = vmul.f32 %v90, %v121
  %v134 = vmul.f32 %v95, %v121
  %v135 = vmul.f32 %v100, %v121
  %v136 = vmul.f32 %v105, %v121
  %v137 = vmul.f32 %v110, %v121
  %v138 = vmul.f32 %v115, %v121
  %v139 = vld [vmem:[%s2] sm:$0xff]
  %v140 = vld [vmem:[%s2 + $0x8] sm:$0xff]
  %v141 = vld [vmem:[%s2 + $0x10] sm:$0xff]
  %v142 = vld [vmem:[%s2 + $0x18] sm:$0xff]
  %v143 = vld [vmem:[%s2 + $0x20] sm:$0xff]
  %v144 = vld [vmem:[%s2 + $0x28] sm:$0xff]
  %v145 = vld [vmem:[%s2 + $0x30] sm:$0xff]
  %v146 = vld [vmem:[%s2 + $0x38] sm:$0xff]
  %v147 = vld [vmem:[%s2 + $0x40] sm:$0xff]
  %v148 = vld [vmem:[%s2 + $0x48] sm:$0xff]
  %v149 = vld [vmem:[%s2 + $0x50] sm:$0xff]
  %v150 = vld [vmem:[%s2 + $0x58] sm:$0xff]
  %v151 = vld [vmem:[%s2 + $0x60] sm:$0xff]
  %v152 = vld [vmem:[%s2 + $0x68] sm:$0xff]
  %v153 = vld [vmem:[%s2 + $0x70] sm:$0xff]
  %v154 = vld [vmem:[%s2 + $0x78] sm:$0xff]
  %156 = vset.pattern.permute.xlu0 0
  %157 = vperm.xlu0 %156, %v139
  %v158 = vpop.permute.xlu0 %157
  %161 = vset.pattern.permute.xlu0 0
  %162 = vperm.xlu0 %161, %v140
  %v163 = vpop.permute.xlu0 %162
  %166 = vset.pattern.permute.xlu0 0
  %167 = vperm.xlu0 %166, %v141
  %v168 = vpop.permute.xlu0 %167
  %171 = vset.pattern.permute.xlu0 0
  %172 = vperm.xlu0 %171, %v142
  %v173 = vpop.permute.xlu0 %172
  %176 = vset.pattern.permute.xlu0 0
  %177 = vperm.xlu0 %176, %v143
  %v178 = vpop.permute.xlu0 %177
  %181 = vset.pattern.permute.xlu0 0
  %182 = vperm.xlu0 %181, %v144
  %v183 = vpop.permute.xlu0 %182
  %186 = vset.pattern.permute.xlu0 0
  %187 = vperm.xlu0 %186, %v145
  %v188 = vpop.permute.xlu0 %187
  %191 = vset.pattern.permute.xlu0 0
  %192 = vperm.xlu0 %191, %v146
  %v193 = vpop.permute.xlu0 %192
  %196 = vset.pattern.permute.xlu0 0
  %197 = vperm.xlu0 %196, %v147
  %v198 = vpop.permute.xlu0 %197
  %201 = vset.pattern.permute.xlu0 0
  %202 = vperm.xlu0 %201, %v148
  %v203 = vpop.permute.xlu0 %202
  %206 = vset.pattern.permute.xlu0 0
  %207 = vperm.xlu0 %206, %v149
  %v208 = vpop.permute.xlu0 %207
  %211 = vset.pattern.permute.xlu0 0
  %212 = vperm.xlu0 %211, %v150
  %v213 = vpop.permute.xlu0 %212
  %216 = vset.pattern.permute.xlu0 0
  %217 = vperm.xlu0 %216, %v151
  %v218 = vpop.permute.xlu0 %217
  %221 = vset.pattern.permute.xlu0 0
  %222 = vperm.xlu0 %221, %v152
  %v223 = vpop.permute.xlu0 %222
  %226 = vset.pattern.permute.xlu0 0
  %227 = vperm.xlu0 %226, %v153
  %v228 = vpop.permute.xlu0 %227
  %231 = vset.pattern.permute.xlu0 0
  %232 = vperm.xlu0 %231, %v154
  %v233 = vpop.permute.xlu0 %232
  %v235 = vadd.f32 %v123, %v158
  %v236 = vadd.f32 %v124, %v163
  %v237 = vadd.f32 %v125, %v168
  %v238 = vadd.f32 %v126, %v173
  %v239 = vadd.f32 %v127, %v178
  %v240 = vadd.f32 %v128, %v183
  %v241 = vadd.f32 %v129, %v188
  %v242 = vadd.f32 %v130, %v193
  %v243 = vadd.f32 %v131, %v198
  %v244 = vadd.f32 %v132, %v203
  %v245 = vadd.f32 %v133, %v208
  %v246 = vadd.f32 %v134, %v213
  %v247 = vadd.f32 %v135, %v218
  %v248 = vadd.f32 %v136, %v223
  %v249 = vadd.f32 %v137, %v228
  %v250 = vadd.f32 %v138, %v233
  %v251 = vmax.f32 %v235, 0.0
  %v252 = vmax.f32 %v236, 0.0
  %v253 = vmax.f32 %v237, 0.0
  %v254 = vmax.f32 %v238, 0.0
  %v255 = vmax.f32 %v239, 0.0
  %v256 = vmax.f32 %v240, 0.0
  %v257 = vmax.f32 %v241, 0.0
  %v258 = vmax.f32 %v242, 0.0
  %v259 = vmax.f32 %v243, 0.0
  %v260 = vmax.f32 %v244, 0.0
  %v261 = vmax.f32 %v245, 0.0
  %v262 = vmax.f32 %v246, 0.0
  %v263 = vmax.f32 %v247, 0.0
  %v264 = vmax.f32 %v248, 0.0
  %v265 = vmax.f32 %v249, 0.0
  %v266 = vmax.f32 %v250, 0.0
  %v267 = vld [vmem:[%s3] sm:$0xff]
  %v268 = vld [vmem:[%s3 + $0x8] sm:$0xff]
  %v269 = vld [vmem:[%s3 + $0x10] sm:$0xff]
  %v270 = vld [vmem:[%s3 + $0x18] sm:$0xff]
  %v271 = vld [vmem:[%s3 + $0x20] sm:$0xff]
  %v272 = vld [vmem:[%s3 + $0x28] sm:$0xff]
  %v273 = vld [vmem:[%s3 + $0x30] sm:$0xff]
  %v274 = vld [vmem:[%s3 + $0x38] sm:$0xff]
  %v275 = vld [vmem:[%s3 + $0x40] sm:$0xff]
  %v276 = vld [vmem:[%s3 + $0x48] sm:$0xff]
  %v277 = vld [vmem:[%s3 + $0x50] sm:$0xff]
  %v278 = vld [vmem:[%s3 + $0x58] sm:$0xff]
  %v279 = vld [vmem:[%s3 + $0x60] sm:$0xff]
  %v280 = vld [vmem:[%s3 + $0x68] sm:$0xff]
  %v281 = vld [vmem:[%s3 + $0x70] sm:$0xff]
  %v282 = vld [vmem:[%s3 + $0x78] sm:$0xff]
  %v283 = vld [vmem:[%s4] sm:$0xff]
  %v284 = vld [vmem:[%s4 + $0x8] sm:$0xff]
  %v285 = vld [vmem:[%s4 + $0x10] sm:$0xff]
  %v286 = vld [vmem:[%s4 + $0x18] sm:$0xff]
  %v287 = vld [vmem:[%s4 + $0x20] sm:$0xff]
  %v288 = vld [vmem:[%s4 + $0x28] sm:$0xff]
  %v289 = vld [vmem:[%s4 + $0x30] sm:$0xff]
  %v290 = vld [vmem:[%s4 + $0x38] sm:$0xff]
  %v291 = vld [vmem:[%s4 + $0x40] sm:$0xff]
  %v292 = vld [vmem:[%s4 + $0x48] sm:$0xff]
  %v293 = vld [vmem:[%s4 + $0x50] sm:$0xff]
  %v294 = vld [vmem:[%s4 + $0x58] sm:$0xff]
  %v295 = vld [vmem:[%s4 + $0x60] sm:$0xff]
  %v296 = vld [vmem:[%s4 + $0x68] sm:$0xff]
  %v297 = vld [vmem:[%s4 + $0x70] sm:$0xff]
  %v298 = vld [vmem:[%s4 + $0x78] sm:$0xff]
  %300 = vset.pattern.permute.xlu0 0
  %301 = vperm.xlu0 %300, %v283
  %v302 = vpop.permute.xlu0 %301
  %305 = vset.pattern.permute.xlu0 0
  %306 = vperm.xlu0 %305, %v284
  %v307 = vpop.permute.xlu0 %306
  %310 = vset.pattern.permute.xlu0 0
  %311 = vperm.xlu0 %310, %v285
  %v312 = vpop.permute.xlu0 %311
  %315 = vset.pattern.permute.xlu0 0
  %316 = vperm.xlu0 %315, %v286
  %v317 = vpop.permute.xlu0 %316
  %320 = vset.pattern.permute.xlu0 0
  %321 = vperm.xlu0 %320, %v287
  %v322 = vpop.permute.xlu0 %321
  %325 = vset.pattern.permute.xlu0 0
  %326 = vperm.xlu0 %325, %v288
  %v327 = vpop.permute.xlu0 %326
  %330 = vset.pattern.permute.xlu0 0
  %331 = vperm.xlu0 %330, %v289
  %v332 = vpop.permute.xlu0 %331
  %335 = vset.pattern.permute.xlu0 0
  %336 = vperm.xlu0 %335, %v290
  %v337 = vpop.permute.xlu0 %336
  %340 = vset.pattern.permute.xlu0 0
  %341 = vperm.xlu0 %340, %v291
  %v342 = vpop.permute.xlu0 %341
  %345 = vset.pattern.permute.xlu0 0
  %346 = vperm.xlu0 %345, %v292
  %v347 = vpop.permute.xlu0 %346
  %350 = vset.pattern.permute.xlu0 0
  %351 = vperm.xlu0 %350, %v293
  %v352 = vpop.permute.xlu0 %351
  %355 = vset.pattern.permute.xlu0 0
  %356 = vperm.xlu0 %355, %v294
  %v357 = vpop.permute.xlu0 %356
  %360 = vset.pattern.permute.xlu0 0
  %361 = vperm.xlu0 %360, %v295
  %v362 = vpop.permute.xlu0 %361
  %365 = vset.pattern.permute.xlu0 0
  %366 = vperm.xlu0 %365, %v296
  %v367 = vpop.permute.xlu0 %366
  %370 = vset.pattern.permute.xlu0 0
  %371 = vperm.xlu0 %370, %v297
  %v372 = vpop.permute.xlu0 %371
  %375 = vset.pattern.permute.xlu0 0
  %376 = vperm.xlu0 %375, %v298
  %v377 = vpop.permute.xlu0 %376
  %379 = vmatprep.subr.mxu0 0.0
  %380 = vmatpush1.msra.mxu0 %v251
  %381 = vmatprep.subr.mxu0 0.0
  %382 = vmatpush1.msra.mxu0 %v252
  %383 = vmatprep.subr.mxu0 0.0
  %384 = vmatpush1.msra.mxu0 %v253
  %385 = vmatprep.subr.mxu0 0.0
  %386 = vmatpush1.msra.mxu0 %v254
  %387 = vmatprep.subr.mxu0 0.0
  %388 = vmatpush1.msra.mxu0 %v255
  %389 = vmatprep.subr.mxu0 0.0
  %390 = vmatpush1.msra.mxu0 %v256
  %391 = vmatprep.subr.mxu0 0.0
  %392 = vmatpush1.msra.mxu0 %v257
  %393 = vmatprep.subr.mxu0 0.0
  %394 = vmatpush1.msra.mxu0 %v258
  %395 = vmatprep.subr.mxu0 0.0
  %396 = vmatpush1.msra.mxu0 %v259
  %397 = vmatprep.subr.mxu0 0.0
  %398 = vmatpush1.msra.mxu0 %v260
  %399 = vmatprep.subr.mxu0 0.0
  %400 = vmatpush1.msra.mxu0 %v261
  %401 = vmatprep.subr.mxu0 0.0
  %402 = vmatpush1.msra.mxu0 %v262
  %403 = vmatprep.subr.mxu0 0.0
  %404 = vmatpush1.msra.mxu0 %v263
  %405 = vmatprep.subr.mxu0 0.0
  %406 = vmatpush1.msra.mxu0 %v264
  %407 = vmatprep.subr.mxu0 0.0
  %408 = vmatpush1.msra.mxu0 %v265
  %409 = vmatprep.subr.mxu0 0.0
  %410 = vmatpush1.msra.mxu0 %v266
  %411 = vmatprep.subr.mxu0 0.0
  %412 = vmatpush1.msra.mxu0 0.0
  %413 = vmatprep.subr.mxu0 0.0
  %414 = vmatpush1.msra.mxu0 0.0
  %415 = vmatprep.subr.mxu0 0.0
  %416 = vmatpush1.msra.mxu0 0.0
  %417 = vmatprep.subr.mxu0 0.0
  %418 = vmatpush1.msra.mxu0 0.0
  %419 = vmatprep.subr.mxu0 0.0
  %420 = vmatpush1.msra.mxu0 0.0
  %421 = vmatprep.subr.mxu0 0.0
  %422 = vmatpush1.msra.mxu0 0.0
  %423 = vmatprep.subr.mxu0 0.0
  %424 = vmatpush1.msra.mxu0 0.0
  %425 = vmatprep.subr.mxu0 0.0
  %426 = vmatpush1.msra.mxu0 0.0
  %427 = vmatprep.subr.mxu0 0.0
  %428 = vmatpush1.msra.mxu0 0.0
  %429 = vmatprep.subr.mxu0 0.0
  %430 = vmatpush1.msra.mxu0 0.0
  %431 = vmatprep.subr.mxu0 0.0
  %432 = vmatpush1.msra.mxu0 0.0
  %433 = vmatprep.subr.mxu0 0.0
  %434 = vmatpush1.msra.mxu0 0.0
  %435 = vmatprep.subr.mxu0 0.0
  %436 = vmatpush1.msra.mxu0 0.0
  %437 = vmatprep.subr.mxu0 0.0
  %438 = vmatpush1.msra.mxu0 0.0
  %439 = vmatprep.subr.mxu0 0.0
  %440 = vmatpush1.msra.mxu0 0.0
  %441 = vmatprep.subr.mxu0 0.0
  %442 = vmatpush1.msra.mxu0 0.0
  %443 = vmatprep.mubr.f32.mxu0 0.0
  %444 = vmatmul.mubr.f32.gmra.mrb[0].mxu0 %v267
  %v445 = vpop.f32.mrb[0].mxu0
  %v446 = vadd.f32 %v302, %v445
  %v447 = vpop.f32.mrb[0].mxu0
  %448 = vmatprep.mubr.f32.mxu0 0.0
  %449 = vmatmul.mubr.f32.gmra.mrb[0].mxu0 %v268
  %v450 = vpop.f32.mrb[0].mxu0
  %v451 = vadd.f32 %v307, %v450
  %v452 = vpop.f32.mrb[0].mxu0
  %453 = vmatprep.mubr.f32.mxu0 0.0
  %454 = vmatmul.mubr.f32.gmra.mrb[0].mxu0 %v269
  %v455 = vpop.f32.mrb[0].mxu0
  %v456 = vadd.f32 %v312, %v455
  %v457 = vpop.f32.mrb[0].mxu0
  %458 = vmatprep.mubr.f32.mxu0 0.0
  %459 = vmatmul.mubr.f32.gmra.mrb[0].mxu0 %v270
  %v460 = vpop.f32.mrb[0].mxu0
  %v461 = vadd.f32 %v317, %v460
  %v462 = vpop.f32.mrb[0].mxu0
  %463 = vmatprep.mubr.f32.mxu0 0.0
  %464 = vmatmul.mubr.f32.gmra.mrb[0].mxu0 %v271
  %v465 = vpop.f32.mrb[0].mxu0
  %v466 = vadd.f32 %v322, %v465
  %v467 = vpop.f32.mrb[0].mxu0
  %468 = vmatprep.mubr.f32.mxu0 0.0
  %469 = vmatmul.mubr.f32.gmra.mrb[0].mxu0 %v272
  %v470 = vpop.f32.mrb[0].mxu0
  %v471 = vadd.f32 %v327, %v470
  %v472 = vpop.f32.mrb[0].mxu0
  %473 = vmatprep.mubr.f32.mxu0 0.0
  %474 = vmatmul.mubr.f32.gmra.mrb[0].mxu0 %v273
  %v475 = vpop.f32.mrb[0].mxu0
  %v476 = vadd.f32 %v332, %v475
  %v477 = vpop.f32.mrb[0].mxu0
  %478 = vmatprep.mubr.f32.mxu0 0.0
  %479 = vmatmul.mubr.f32.gmra.mrb[0].mxu0 %v274
  %v480 = vpop.f32.mrb[0].mxu0
  %v481 = vadd.f32 %v337, %v480
  %v482 = vpop.f32.mrb[0].mxu0
  %483 = vmatprep.mubr.f32.mxu0 0.0
  %484 = vmatmul.mubr.f32.gmra.mrb[0].mxu0 %v275
  %v485 = vpop.f32.mrb[0].mxu0
  %v486 = vadd.f32 %v342, %v485
  %v487 = vpop.f32.mrb[0].mxu0
  %488 = vmatprep.mubr.f32.mxu0 0.0
  %489 = vmatmul.mubr.f32.gmra.mrb[0].mxu0 %v276
  %v490 = vpop.f32.mrb[0].mxu0
  %v491 = vadd.f32 %v347, %v490
  %v492 = vpop.f32.mrb[0].mxu0
  %493 = vmatprep.mubr.f32.mxu0 0.0
  %494 = vmatmul.mubr.f32.gmra.mrb[0].mxu0 %v277
  %v495 = vpop.f32.mrb[0].mxu0
  %v496 = vadd.f32 %v352, %v495
  %v497 = vpop.f32.mrb[0].mxu0
  %498 = vmatprep.mubr.f32.mxu0 0.0
  %499 = vmatmul.mubr.f32.gmra.mrb[0].mxu0 %v278
  %v500 = vpop.f32.mrb[0].mxu0
  %v501 = vadd.f32 %v357, %v500
  %v502 = vpop.f32.mrb[0].mxu0
  %503 = vmatprep.mubr.f32.mxu0 0.0
  %504 = vmatmul.mubr.f32.gmra.mrb[0].mxu0 %v279
  %v505 = vpop.f32.mrb[0].mxu0
  %v506 = vadd.f32 %v362, %v505
  %v507 = vpop.f32.mrb[0].mxu0
  %508 = vmatprep.mubr.f32.mxu0 0.0
  %509 = vmatmul.mubr.f32.gmra.mrb[0].mxu0 %v280
  %v510 = vpop.f32.mrb[0].mxu0
  %v511 = vadd.f32 %v367, %v510
  %v512 = vpop.f32.mrb[0].mxu0
  %513 = vmatprep.mubr.f32.mxu0 0.0
  %514 = vmatmul.mubr.f32.gmra.mrb[0].mxu0 %v281
  %v515 = vpop.f32.mrb[0].mxu0
  %v516 = vadd.f32 %v372, %v515
  %v517 = vpop.f32.mrb[0].mxu0
  %518 = vmatprep.mubr.f32.mxu0 0.0
  %519 = vmatmul.mubr.f32.gmra.mrb[0].mxu0 %v282
  %v520 = vpop.f32.mrb[0].mxu0
  %v521 = vadd.f32 %v377, %v520
  %v522 = vpop.f32.mrb[0].mxu0
  %523 = vdwg.mxu0
  %v524 = vmax.f32 %v446, 0.0
  %v525 = vmax.f32 %v451, 0.0
  %v526 = vmax.f32 %v456, 0.0
  %v527 = vmax.f32 %v461, 0.0
  %v528 = vmax.f32 %v466, 0.0
  %v529 = vmax.f32 %v471, 0.0
  %v530 = vmax.f32 %v476, 0.0
  %v531 = vmax.f32 %v481, 0.0
  %v532 = vmax.f32 %v486, 0.0
  %v533 = vmax.f32 %v491, 0.0
  %v534 = vmax.f32 %v496, 0.0
  %v535 = vmax.f32 %v501, 0.0
  %v536 = vmax.f32 %v506, 0.0
  %v537 = vmax.f32 %v511, 0.0
  %v538 = vmax.f32 %v516, 0.0
  %v539 = vmax.f32 %v521, 0.0
  %540 = vst [vmem:[%s5] sm:$0xff] %v524
  %541 = vst [vmem:[%s5 + $0x8] sm:$0xff] %v525
  %542 = vst [vmem:[%s5 + $0x10] sm:$0xff] %v526
  %543 = vst [vmem:[%s5 + $0x18] sm:$0xff] %v527
  %544 = vst [vmem:[%s5 + $0x20] sm:$0xff] %v528
  %545 = vst [vmem:[%s5 + $0x28] sm:$0xff] %v529
  %546 = vst [vmem:[%s5 + $0x30] sm:$0xff] %v530
  %547 = vst [vmem:[%s5 + $0x38] sm:$0xff] %v531
  %548 = vst [vmem:[%s5 + $0x40] sm:$0xff] %v532
  %549 = vst [vmem:[%s5 + $0x48] sm:$0xff] %v533
  %550 = vst [vmem:[%s5 + $0x50] sm:$0xff] %v534
  %551 = vst [vmem:[%s5 + $0x58] sm:$0xff] %v535
  %552 = vst [vmem:[%s5 + $0x60] sm:$0xff] %v536
  %553 = vst [vmem:[%s5 + $0x68] sm:$0xff] %v537
  %554 = vst [vmem:[%s5 + $0x70] sm:$0xff] %v538
  %555 = vst [vmem:[%s5 + $0x78] sm:$0xff] %v539
  // Predicated region
  $region22: #{toy_feature_net.1} parent=0 // pred_check
    _
  $region23: #{toy_feature_net.1} parent=0 // pred_check_branch
    %557 = sbr.rel (0) target = $region25
  $region24: #{toy_feature_net.1} parent=0 // pred_region
    _
  $region25: #{toy_feature_net.1} parent=0 // pred_fallthru
    _
  // Predicated region
  $region26: #{toy_feature_net.1} parent=0 // pred_check
    _
  $region27: #{toy_feature_net.1} parent=0 // pred_check_branch
    %559 = sbr.rel (0) target = $region29
  $region28: #{toy_feature_net.1} parent=0 // pred_region
    _
  $region29: #{toy_feature_net.1} parent=0 // pred_fallthru
    _

</llo_original>
